<compile_context>
chip_gen: v7x
topology: tpu7x:2x2x1
jax: 0.10.0
libtpu: 0.0.40
codegen_flags: <defaults>
</compile_context>

<pallas_src>
import jax
import jax.numpy as jnp
from jax.experimental import pallas as pl
from jax.experimental.pallas import tpu as pltpu


def _identity_kernel(x_ref, o_ref):
    # Straight VMEM tile copy (vld + vst); fully hidden under the HBM DMA.
    o_ref[...] = x_ref[...]


def _round_up(x, m):
    return ((x + m - 1) // m) * m


def _vmem_budget_bytes():
    """(vmem_limit_bytes, max_block_bytes) tuned per TPU generation."""
    cap = None
    try:
        info = pltpu.get_tpu_info()
        cap = getattr(info, "vmem_capacity_bytes", None)
    except Exception:
        cap = None
    if cap is None:
        cap = 64 * 1024 * 1024  # conservative: assume the smaller (v7x-class) VMEM
    if cap >= 128 * 1024 * 1024:
        # v5e / v6e: 128 MiB physical VMEM -> large blocks, generous budget.
        return 96 * 1024 * 1024, 16 * 1024 * 1024
    # v7x-class: 64 MiB physical VMEM -> 4 double-buffered tiles must fit.
    return 48 * 1024 * 1024, 8 * 1024 * 1024


def identity_pallas(x, *, alias_output=False, passthrough=False, min_grid_steps=8):
    """Identity forward. Returns a tensor equal to `x` (any shape / dtype).

    passthrough=True  -> return `x` directly (the true zero-byte Identity).
    alias_output=True -> alias the kernel output onto the input buffer
                         (use with donated inputs in production).
    """
    if passthrough:
        return x  # nn.Identity needs zero data movement.

    orig_shape = x.shape
    dtype = x.dtype
    total = int(x.size)

    if total == 0:
        return x  # empty tensor: nothing to copy, avoid a zero-size grid.

    itemsize = jnp.dtype(dtype).itemsize
    flat = x.reshape(-1)  # layout-only view, no HBM traffic

    # ---- lane width: largest multiple of 128 that divides the element count.
    lane = None
    for cand in (4096, 2048, 1024, 512, 256, 128):
        if total % cand == 0:
            lane = cand
            break

    padded_total = total
    if lane is None:
        # Rare fallback (element count not a multiple of 128): minimal tail pad.
        lane = 128
        padded_total = _round_up(total, lane)
        flat = jnp.pad(flat, (0, padded_total - total))

    rows = padded_total // lane
    x2d = flat.reshape(rows, lane)

    vmem_limit, max_block_bytes = _vmem_budget_bytes()
    row_bytes = lane * itemsize
    max_block_rows = max(8, (max_block_bytes // row_bytes) // 8 * 8)

    if rows <= 8 or padded_total * itemsize <= 256 * 1024:
        # Tiny tensor: a single block equal to the full array (legal regardless
        # of (8,128) divisibility); pipelining buys nothing at this size.
        block_rows = rows
        grid = 1
    else:
        # Target >= min_grid_steps steps so read(i+1) overlaps writeback(i)
        # and both v7x TensorCores get work, capped by the per-generation
        # block-size limit.  The last block may be ragged; Pallas masks it.
        target_rows = max(8, _round_up(pl.cdiv(rows, min_grid_steps), 8))
        block_rows = min(max_block_rows, target_rows)
        grid = pl.cdiv(rows, block_rows)

    # Actual traffic: one read + one write of the real payload.
    cost = pl.CostEstimate(
        flops=0, transcendentals=0, bytes_accessed=2 * total * itemsize)

    aliases = {0: 0} if (alias_output and padded_total == total) else {}

    out2d = pl.pallas_call(
        _identity_kernel,
        out_shape=jax.ShapeDtypeStruct((rows, lane), dtype),
        grid_spec=pltpu.PrefetchScalarGridSpec(
            num_scalar_prefetch=0,
            grid=(grid,),
            in_specs=[pl.BlockSpec((block_rows, lane), lambda i: (i, 0))],
            out_specs=pl.BlockSpec((block_rows, lane), lambda i: (i, 0)),
        ),
        compiler_params=pltpu.CompilerParams(
            dimension_semantics=("parallel",),  # shard steps across TCs on v7x
            vmem_limit_bytes=vmem_limit,
        ),
        cost_estimate=cost,
        input_output_aliases=aliases,
    )(x2d)

    out_flat = out2d.reshape(-1)
    if padded_total != total:
        out_flat = out_flat[:total]
    return out_flat.reshape(orig_shape)


if __name__ == "__main__":
    # Small shape consistent with the module's usage context (N, C, H, W).
    N, C, H, W = 2, 4, 16, 16

    key = jax.random.PRNGKey(0)
    x = jax.random.normal(key, (N, C, H, W), dtype=jnp.float32)

    out = identity_pallas(x)
    out = jax.block_until_ready(out)

    assert out.shape == x.shape
    assert out.dtype == x.dtype
    assert jnp.array_equal(out, x), "identity mismatch vs input"

    # Also exercise an awkward (non-multiple-of-128) size through the fallback.
    y = jax.random.normal(jax.random.PRNGKey(1), (3, 5, 7), dtype=jnp.float32)
    out_y = jax.block_until_ready(identity_pallas(y))
    assert jnp.array_equal(out_y, y), "identity mismatch (ragged fallback)"

    print("KERNEL_OK")
</pallas_src>

<mosaic_0001>
module attributes {stable_mosaic.version = 11 : i64} {
  func.func @_identity_kernel(%arg0: i32, %arg1: memref<1x2048xf32, #tpu.memory_space<vmem>>, %arg2: memref<1x2048xf32, #tpu.memory_space<vmem>>) attributes {dimension_semantics = [#tpu.dimension_semantics<parallel>], iteration_bounds = array<i64: 1>, scalar_prefetch = 0 : i64, scratch_operands = 0 : i64, tpu.core_type = #tpu.core_type<tc>, window_params = [{transform_indices = @transform_0, window_bounds = array<i64: 1, 2048>}, {transform_indices = @transform_1, window_bounds = array<i64: 1, 2048>}]} {
    %c0 = arith.constant 0 : index
    %c0_0 = arith.constant 0 : index
    %0 = vector.load %arg1[%c0, %c0_0] : memref<1x2048xf32, #tpu.memory_space<vmem>>, vector<1x2048xf32>
    %c0_1 = arith.constant 0 : index
    %c0_2 = arith.constant 0 : index
    %1 = vector.load %arg2[%c0_1, %c0_2] : memref<1x2048xf32, #tpu.memory_space<vmem>>, vector<1x2048xf32>
    tpu.vector_store %arg2[%c0_1, %c0_2], %0 {strides = array<i32>} : memref<1x2048xf32, #tpu.memory_space<vmem>>, vector<1x2048xf32>,
    return
  }
  func.func @transform_0(%arg0: i32) -> (i32, i32) {
    %c0_i32 = arith.constant 0 : i32
    %c0_i32_0 = arith.constant 0 : i32
    return %arg0, %c0_i32 : i32, i32
  }
  func.func @transform_1(%arg0: i32) -> (i32, i32) {
    %c0_i32 = arith.constant 0 : i32
    %c0_i32_0 = arith.constant 0 : i32
    return %arg0, %c0_i32 : i32, i32
  }
}

</mosaic_0001>

<llo_original>
// kernel: tpu_custom_call.1
$region0: #{tpu_custom_call.1}
  #allocation0 [shape = 'u32[]', space=smem, size = 0x4, offset = 0x4, fixed_abs, tag = 'smem constant byte address 0x4 - core index']
  #allocation1 [shape = 'u32[144,128]{1,0:T(1,128)}', space=vmem, size = 0x12000, scoped, tag = 'internal scratch']
  %s0 = inlined_call_operand.hbm [shape: f32[1,2048], index: 0, kind: input, shape index: {}]
  %s1 = inlined_call_operand.hbm [shape: f32[1,2048], index: 1, kind: output, shape index: {}]
  %s2 = sld [smem:[#allocation0]]
  $region18: #{tpu_custom_call.1} parent=0
    _
  %s4 = ssub.s32 1, %s2
  %s5 = scalar_select 0, %s4, %s2
  $region1: #{tpu_custom_call.1} parent=0
    #allocation2 [shape = 'u8[8192]{0}', space=vmem, size = 0x2000, scoped, tag = 'input window, operand 0, single buffered']
    #allocation3 [shape = 's32[1]{0}', space=sflag, size = 0x4, scoped, tag = 'scoped memory for tpu_custom_call.1']
    #allocation4 [shape = 's32[1]{0}', space=sflag, size = 0x4, scoped, tag = 'scoped memory for tpu_custom_call.1']
    #allocation5 [shape = 'u8[8192]{0}', space=vmem, size = 0x2000, scoped, tag = 'output window, operand 0, single buffered']
    %6 = vsyncpa [#allocation3], 0
    %7 = vsyncpa [#allocation4], 0
    // Predicated region
    $region2: #{tpu_custom_call.1} parent=1 // pred_check
      _
    $region3: #{tpu_custom_call.1} parent=1 // pred_check_branch
      %9 = sbr.rel (0) target = $region5
    $region4: #{tpu_custom_call.1} parent=1 // pred_region
      %s11 = ssub.s32 256, 256
      %12 = vsyncadd [#allocation3], %s11
      %s14 = sshll.u32 [#allocation2], 4
      %s15 = int_to_ptr.vmem [resolvable:$true] %s14
      %17 = dma.hbm_to_vmem [thread:$0]  %s0, 256, %s15, [#allocation3]
    $region5: #{tpu_custom_call.1} parent=1 // pred_fallthru
      _
    // Predicated region
    $region6: #{tpu_custom_call.1} parent=1 // pred_check
      _
    $region7: #{tpu_custom_call.1} parent=1 // pred_check_branch
      %19 = sbr.rel (0) target = $region9
    $region8: #{tpu_custom_call.1} parent=1 // pred_region
      %20 = dma.done [#allocation3], 256
    $region9: #{tpu_custom_call.1} parent=1 // pred_fallthru
      _
    %v21 = vld [vmem:[#allocation2] sm:$0xff]
    %v22 = vld [vmem:[#allocation2 + $0x8] sm:$0xff]
    %23 = vst [vmem:[#allocation5] sm:$0xff] %v21
    %24 = vst [vmem:[#allocation5 + $0x8] sm:$0xff] %v22
    // Predicated region
    $region10: #{tpu_custom_call.1} parent=1 // pred_check
      _
    $region11: #{tpu_custom_call.1} parent=1 // pred_check_branch
      %26 = sbr.rel (0) target = $region13
    $region12: #{tpu_custom_call.1} parent=1 // pred_region
      %s28 = ssub.s32 256, 256
      %29 = vsyncadd [#allocation4], %s28
      %s31 = sshll.u32 [#allocation5], 4
      %s32 = int_to_ptr.vmem [resolvable:$true] %s31
      %34 = dma.vmem_to_hbm [thread:$0]  %s32, 256, %s1, [#allocation4]
    $region13: #{tpu_custom_call.1} parent=1 // pred_fallthru
      _
    // Predicated region
    $region14: #{tpu_custom_call.1} parent=1 // pred_check
      _
    $region15: #{tpu_custom_call.1} parent=1 // pred_check_branch
      %36 = sbr.rel (0) target = $region17
    $region16: #{tpu_custom_call.1} parent=1 // pred_region
      %37 = dma.done [#allocation4], 256
    $region17: #{tpu_custom_call.1} parent=1 // pred_fallthru
      _
    %38 = vsyncpa [#allocation3], 1
    %39 = vsyncpa [#allocation4], 1

</llo_original>
